<compile_context>
chip_gen: v6e
topology: v6e:2x2x1
jax: 0.10.0
libtpu: 0.0.40
codegen_flags: <defaults>
</compile_context>

<pallas_src>
import functools

import jax
import jax.numpy as jnp
import numpy as np
from jax.experimental import pallas as pl
from jax.experimental.pallas import tpu as pltpu

BN_EPS = 1e-5


def _round_up(n, m):
    return ((n + m - 1) // m) * m


def _pick_tile(dim_pad, cap=512):
    """Largest multiple-of-128 divisor of dim_pad that is <= cap."""
    if dim_pad <= cap:
        return dim_pad
    t = cap - (cap % 128)
    while t >= 128:
        if dim_pad % t == 0:
            return t
        t -= 128
    return 128


def _pad2(a, rows, cols):
    r, c = a.shape
    return jnp.pad(a, ((0, rows - r), (0, cols - c)))


def _vmem_limit(B, I_pad, Ht, Ot, nH, itemsize, cache_hact):
    need = (2 * B * I_pad * itemsize          # x block (double-buffered)
            + 2 * I_pad * Ht * itemsize       # w1 tiles
            + 2 * Ht * Ot * itemsize          # w2 tiles
            + 2 * B * Ot * 4                  # out block (f32)
            + 2 * (2 * Ht + Ot) * 4           # gamma, beta, b2 (f32)
            + (nH * B * Ht * itemsize if cache_hact else 0))  # h_act cache
    return int(min(max(2 * need + (4 << 20), 16 << 20), 40 << 20))


def mlp_kernel(x_ref, w1_ref, gamma_ref, beta_ref, alpha_ref, w2_ref, b2_ref,
               out_ref, *scratch, cache_hact):
    o = pl.program_id(0)   # output-tile index (outer)
    j = pl.program_id(1)   # hidden-tile / reduction index (inner)

    # Output block is resident across the whole j loop; init it with b2.
    @pl.when(j == 0)
    def _():
        out_ref[...] = jnp.broadcast_to(b2_ref[...], out_ref.shape)

    def layer1():
        # Linear 1 (bias omitted: it cancels exactly under training-mode BN).
        h = jnp.dot(x_ref[...], w1_ref[...], preferred_element_type=jnp.float32)
        # BatchNorm1d, training mode (biased batch variance), folded epilogue.
        mean = jnp.mean(h, axis=0, keepdims=True)
        hc = h - mean
        var = jnp.mean(hc * hc, axis=0, keepdims=True)
        scale = gamma_ref[...] * jax.lax.rsqrt(var + BN_EPS)   # rsqrt -> EUP
        h_bn = hc * scale + beta_ref[...]
        # PReLU (single shared alpha, scalar read from SMEM): one select+mul.
        alpha = alpha_ref[0, 0]
        return h_bn * jnp.where(h_bn >= 0.0, 1.0, alpha)

    if cache_hact:
        hcache_ref, = scratch

        @pl.when(o == 0)                       # layer 1 computed once per j
        def _():
            hcache_ref[j] = layer1().astype(hcache_ref.dtype)

        h_act = hcache_ref[j]
    else:
        h_act = layer1().astype(w2_ref.dtype)

    # Linear 2 partial product, accumulated directly into the out block.
    out_ref[...] += jnp.dot(h_act.astype(w2_ref.dtype), w2_ref[...],
                            preferred_element_type=jnp.float32)


def mlp_forward(x, params, *, mxu_dtype=jnp.bfloat16):
    """Fused MLP forward. x: (B, I) float32. Returns (B, O) float32."""
    w1, b1, gamma, beta, alpha, w2, b2 = params
    del b1  # Linear bias immediately before training-mode BN is a no-op.
    B, I = x.shape
    H = w1.shape[1]
    O = w2.shape[1]

    I_pad = _round_up(I, 128)
    H_pad = _round_up(H, 128)
    O_pad = _round_up(O, 128)
    Ht = _pick_tile(H_pad)
    Ot = _pick_tile(O_pad)
    nH = H_pad // Ht
    nO = O_pad // Ot
    cache_hact = nO > 1
    itemsize = jnp.dtype(mxu_dtype).itemsize

    # Zero padding is inert: padded x cols meet zero w1 rows; padded H columns
    # give h == 0 with gamma_pad == 0 / beta_pad == 0 -> activation 0 and zero
    # w2 rows; padded O columns are sliced off below.
    xp = _pad2(x, B, I_pad).astype(mxu_dtype)
    w1p = _pad2(w1, I_pad, H_pad).astype(mxu_dtype)
    w2p = _pad2(w2, H_pad, O_pad).astype(mxu_dtype)
    gammap = _pad2(gamma, 1, H_pad).astype(jnp.float32)
    betap = _pad2(beta, 1, H_pad).astype(jnp.float32)
    b2p = _pad2(b2, 1, O_pad).astype(jnp.float32)
    alphap = alpha.reshape(1, 1).astype(jnp.float32)

    # For o > 0 the layer-1 inputs are unused: pin their block index to tile 0
    # so no fresh DMA is issued (Pallas skips copies when the index repeats).
    w1_map = lambda o, j: (0, jnp.where(o == 0, j, 0))

    scratch = []
    if cache_hact:
        scratch.append(pltpu.VMEM((nH, B, Ht), mxu_dtype))

    kernel = functools.partial(mlp_kernel, cache_hact=cache_hact)

    out = pl.pallas_call(
        kernel,
        out_shape=jax.ShapeDtypeStruct((B, O_pad), jnp.float32),
        grid=(nO, nH),
        in_specs=[
            pl.BlockSpec((B, I_pad), lambda o, j: (0, 0)),        # x (resident)
            pl.BlockSpec((I_pad, Ht), w1_map),                    # w1 tile
            pl.BlockSpec((1, Ht), w1_map),                        # gamma
            pl.BlockSpec((1, Ht), w1_map),                        # beta
            pl.BlockSpec(memory_space=pltpu.MemorySpace.SMEM),    # PReLU alpha
            pl.BlockSpec((Ht, Ot), lambda o, j: (j, o)),          # w2 tile
            pl.BlockSpec((1, Ot), lambda o, j: (0, o)),           # b2
        ],
        out_specs=pl.BlockSpec((B, Ot), lambda o, j: (0, o)),
        scratch_shapes=scratch,
        compiler_params=pltpu.CompilerParams(
            # o axis stays "arbitrary": the h_act cache is filled at o == 0,
            # valid only when one core walks the full grid (trades v7x 2-TC
            # sharding for single-pass w1 streaming — the kernel is DMA-bound).
            dimension_semantics=("arbitrary", "arbitrary"),
            vmem_limit_bytes=_vmem_limit(B, I_pad, Ht, Ot, nH, itemsize,
                                         cache_hact),
        ),
    )(xp, w1p, gammap, betap, alphap, w2p, b2p)

    return out[:, :O]


def init_params(key, input_size, hidden_size, output_size):
    k1, k2, k3, k4 = jax.random.split(key, 4)
    # PyTorch-equivalent parameters, stored (in, out) for row-major matmuls.
    lim1 = 1.0 / np.sqrt(input_size)
    w1 = jax.random.uniform(k1, (input_size, hidden_size), jnp.float32, -lim1, lim1)
    b1 = jax.random.uniform(k2, (1, hidden_size), jnp.float32, -lim1, lim1)
    gamma = jnp.ones((1, hidden_size), jnp.float32)   # BatchNorm1d weight init
    beta = jnp.zeros((1, hidden_size), jnp.float32)   # BatchNorm1d bias init
    alpha = jnp.full((1, 1), 0.25, jnp.float32)       # PReLU default
    lim2 = 1.0 / np.sqrt(hidden_size)
    w2 = jax.random.uniform(k3, (hidden_size, output_size), jnp.float32, -lim2, lim2)
    b2 = jax.random.uniform(k4, (1, output_size), jnp.float32, -lim2, lim2)
    return (w1, b1, gamma, beta, alpha, w2, b2)


def mlp_reference(x, params):
    w1, b1, gamma, beta, alpha, w2, b2 = params
    h = x @ w1 + b1
    mean = jnp.mean(h, axis=0, keepdims=True)
    var = jnp.mean((h - mean) ** 2, axis=0, keepdims=True)
    h = gamma * (h - mean) / jnp.sqrt(var + BN_EPS) + beta
    h = jnp.where(h >= 0.0, h, alpha[0, 0] * h)
    return h @ w2 + b2


if __name__ == "__main__":
    key = jax.random.PRNGKey(0)
    k_small, k_big = jax.random.split(key)

    # --- Small config (single O/H tile; no activation cache) ---------------
    batch, input_size, hidden_size, output_size = 8, 32, 64, 16
    kx, kp = jax.random.split(k_small)
    x = jax.random.normal(kx, (batch, input_size), jnp.float32)
    params = init_params(kp, input_size, hidden_size, output_size)
    ref = mlp_reference(x, params)

    # f32 MXU path: tight check against the PyTorch-style reference.
    out_f32 = jax.block_until_ready(mlp_forward(x, params, mxu_dtype=jnp.float32))
    np.testing.assert_allclose(np.asarray(out_f32), np.asarray(ref),
                               rtol=1e-4, atol=1e-4)

    # bf16 MXU path (default perf path): f32 accumulation + f32 BN/PReLU.
    out_bf16 = jax.block_until_ready(mlp_forward(x, params))
    np.testing.assert_allclose(np.asarray(out_bf16), np.asarray(ref),
                               rtol=2e-2, atol=2e-2)

    # --- Multi-tile config (nH > 1 and nO > 1): exercises the h_act VMEM
    #     cache and the clamped w1/gamma/beta index maps --------------------
    batch2, in2, hid2, out2 = 16, 48, 1024, 768
    kx2, kp2 = jax.random.split(k_big)
    x2 = jax.random.normal(kx2, (batch2, in2), jnp.float32)
    params2 = init_params(kp2, in2, hid2, out2)
    ref2 = mlp_reference(x2, params2)
    out2_f32 = jax.block_until_ready(mlp_forward(x2, params2, mxu_dtype=jnp.float32))
    np.testing.assert_allclose(np.asarray(out2_f32), np.asarray(ref2),
                               rtol=5e-3, atol=5e-3)

    print("KERNEL_OK")
</pallas_src>

<mosaic_0001>
module attributes {stable_mosaic.version = 11 : i64} {
  func.func @mlp_kernel(%arg0: i32, %arg1: i32, %arg2: memref<8x128xf32, #tpu.memory_space<vmem>>, %arg3: memref<128x128xf32, #tpu.memory_space<vmem>>, %arg4: memref<1x128xf32, #tpu.memory_space<vmem>>, %arg5: memref<1x128xf32, #tpu.memory_space<vmem>>, %arg6: memref<1x1xf32, #tpu.memory_space<smem>>, %arg7: memref<128x128xf32, #tpu.memory_space<vmem>>, %arg8: memref<1x128xf32, #tpu.memory_space<vmem>>, %arg9: memref<8x128xf32, #tpu.memory_space<vmem>>) attributes {dimension_semantics = [#tpu.dimension_semantics<arbitrary>, #tpu.dimension_semantics<arbitrary>], iteration_bounds = array<i64: 1, 1>, scalar_prefetch = 0 : i64, scratch_operands = 0 : i64, tpu.core_type = #tpu.core_type<tc>, window_params = [{pipeline_mode = #tpu.pipeline_mode<synchronous>, transform_indices = @transform_0, window_bounds = array<i64: 8, 128>}, {transform_indices = @transform_1, window_bounds = array<i64: 128, 128>}, {transform_indices = @transform_2, window_bounds = array<i64: 1, 128>}, {transform_indices = @transform_3, window_bounds = array<i64: 1, 128>}, {transform_indices = @transform_4, window_bounds = array<i64: 1, 1>}, {transform_indices = @transform_5, window_bounds = array<i64: 128, 128>}, {transform_indices = @transform_6, window_bounds = array<i64: 1, 128>}, {transform_indices = @transform_7, window_bounds = array<i64: 8, 128>}]} {
    %c0_i32 = arith.constant 0 : i32
    %0 = arith.cmpi eq, %arg1, %c0_i32 : i32
    %1 = arith.extui %0 : i1 to i32
    %c0_i32_0 = arith.constant 0 : i32
    %2 = arith.cmpi ne, %1, %c0_i32_0 : i32
    scf.if %2 {
      %c0_24 = arith.constant 0 : index
      %c0_25 = arith.constant 0 : index
      %39 = vector.load %arg8[%c0_24, %c0_25] : memref<1x128xf32, #tpu.memory_space<vmem>>, vector<1x128xf32>
      %40 = vector.shape_cast %39 : vector<1x128xf32> to vector<1x128xf32>
      %41 = vector.broadcast %40 : vector<1x128xf32> to vector<8x128xf32>
      %c0_26 = arith.constant 0 : index
      %c0_27 = arith.constant 0 : index
      %42 = vector.load %arg9[%c0_26, %c0_27] : memref<8x128xf32, #tpu.memory_space<vmem>>, vector<8x128xf32>
      tpu.vector_store %arg9[%c0_26, %c0_27], %41 {strides = array<i32>} : memref<8x128xf32, #tpu.memory_space<vmem>>, vector<8x128xf32>,
    } else {
    }
    %c0 = arith.constant 0 : index
    %c0_1 = arith.constant 0 : index
    %3 = vector.load %arg2[%c0, %c0_1] : memref<8x128xf32, #tpu.memory_space<vmem>>, vector<8x128xf32>
    %c0_2 = arith.constant 0 : index
    %c0_3 = arith.constant 0 : index
    %4 = vector.load %arg3[%c0_2, %c0_3] : memref<128x128xf32, #tpu.memory_space<vmem>>, vector<128x128xf32>
    %cst = arith.constant dense<0.000000e+00> : vector<8x128xf32>
    %5 = tpu.matmul %3, %4, %cst {dimension_numbers = #tpu.dot_dimension_numbers<[1], [0], [0], [1], [0, 0, 1, 1], [], []>} : vector<8x128xf32>, vector<128x128xf32>, vector<8x128xf32> -> vector<8x128xf32>
    %cst_4 = arith.constant dense<0.000000e+00> : vector<128xf32>
    %6 = vector.multi_reduction <add>, %5, %cst_4 [0] : vector<8x128xf32> to vector<128xf32>
    %7 = vector.shape_cast %6 : vector<128xf32> to vector<1x128xf32>
    %cst_5 = arith.constant 8.000000e+00 : f32
    %8 = vector.broadcast %cst_5 : f32 to vector<1x128xf32>
    %9 = arith.divf %7, %8 : vector<1x128xf32>
    %10 = vector.broadcast %9 : vector<1x128xf32> to vector<8x128xf32>
    %11 = arith.subf %5, %10 : vector<8x128xf32>
    %12 = arith.mulf %11, %11 : vector<8x128xf32>
    %cst_6 = arith.constant dense<0.000000e+00> : vector<128xf32>
    %13 = vector.multi_reduction <add>, %12, %cst_6 [0] : vector<8x128xf32> to vector<128xf32>
    %14 = vector.shape_cast %13 : vector<128xf32> to vector<1x128xf32>
    %cst_7 = arith.constant 8.000000e+00 : f32
    %15 = vector.broadcast %cst_7 : f32 to vector<1x128xf32>
    %16 = arith.divf %14, %15 : vector<1x128xf32>
    %c0_8 = arith.constant 0 : index
    %c0_9 = arith.constant 0 : index
    %17 = vector.load %arg4[%c0_8, %c0_9] : memref<1x128xf32, #tpu.memory_space<vmem>>, vector<1x128xf32>
    %cst_10 = arith.constant 9.99999974E-6 : f32
    %18 = vector.broadcast %cst_10 : f32 to vector<1x128xf32>
    %19 = arith.addf %16, %18 : vector<1x128xf32>
    %20 = math.rsqrt %19 : vector<1x128xf32>
    %21 = arith.mulf %17, %20 : vector<1x128xf32>
    %22 = vector.broadcast %21 : vector<1x128xf32> to vector<8x128xf32>
    %23 = arith.mulf %11, %22 : vector<8x128xf32>
    %c0_11 = arith.constant 0 : index
    %c0_12 = arith.constant 0 : index
    %24 = vector.load %arg5[%c0_11, %c0_12] : memref<1x128xf32, #tpu.memory_space<vmem>>, vector<1x128xf32>
    %25 = vector.broadcast %24 : vector<1x128xf32> to vector<8x128xf32>
    %26 = arith.addf %23, %25 : vector<8x128xf32>
    %c0_13 = arith.constant 0 : index
    %c0_14 = arith.constant 0 : index
    %27 = memref.load %arg6[%c0_13, %c0_14] : memref<1x1xf32, #tpu.memory_space<smem>>
    %cst_15 = arith.constant 0.000000e+00 : f32
    %28 = vector.broadcast %cst_15 : f32 to vector<8x128xf32>
    %29 = arith.cmpf oge, %26, %28 : vector<8x128xf32>
    %cst_16 = arith.constant 1.000000e+00 : f32
    %30 = vector.broadcast %cst_16 : f32 to vector<8x128xf32>
    %31 = vector.broadcast %27 : f32 to vector<8x128xf32>
    %32 = arith.select %29, %30, %31 : vector<8x128xi1>, vector<8x128xf32>
    %33 = arith.mulf %26, %32 : vector<8x128xf32>
    %c0_17 = arith.constant 0 : index
    %c0_18 = arith.constant 0 : index
    %34 = vector.load %arg9[%c0_17, %c0_18] : memref<8x128xf32, #tpu.memory_space<vmem>>, vector<8x128xf32>
    %c0_19 = arith.constant 0 : index
    %c0_20 = arith.constant 0 : index
    %35 = vector.load %arg7[%c0_19, %c0_20] : memref<128x128xf32, #tpu.memory_space<vmem>>, vector<128x128xf32>
    %cst_21 = arith.constant dense<0.000000e+00> : vector<8x128xf32>
    %36 = tpu.matmul %33, %35, %cst_21 {dimension_numbers = #tpu.dot_dimension_numbers<[1], [0], [0], [1], [0, 0, 1, 1], [], []>} : vector<8x128xf32>, vector<128x128xf32>, vector<8x128xf32> -> vector<8x128xf32>
    %37 = arith.addf %34, %36 : vector<8x128xf32>
    %c0_22 = arith.constant 0 : index
    %c0_23 = arith.constant 0 : index
    %38 = vector.load %arg9[%c0_22, %c0_23] : memref<8x128xf32, #tpu.memory_space<vmem>>, vector<8x128xf32>
    tpu.vector_store %arg9[%c0_22, %c0_23], %37 {strides = array<i32>} : memref<8x128xf32, #tpu.memory_space<vmem>>, vector<8x128xf32>,
    return
  }
  func.func @transform_0(%arg0: i32, %arg1: i32) -> (i32, i32) {
    %c0_i32 = arith.constant 0 : i32
    %c0_i32_0 = arith.constant 0 : i32
    %c0_i32_1 = arith.constant 0 : i32
    return %c0_i32, %c0_i32_0 : i32, i32
  }
  func.func @transform_1(%arg0: i32, %arg1: i32) -> (i32, i32) {
    %c0_i32 = arith.constant 0 : i32
    %0 = arith.cmpi eq, %arg0, %c0_i32 : i32
    %c0_i32_0 = arith.constant 0 : i32
    %1 = arith.select %0, %arg1, %c0_i32_0 : i32
    %c0_i32_1 = arith.constant 0 : i32
    %c0_i32_2 = arith.constant 0 : i32
    return %c0_i32_1, %1 : i32, i32
  }
  func.func @transform_2(%arg0: i32, %arg1: i32) -> (i32, i32) {
    %c0_i32 = arith.constant 0 : i32
    %0 = arith.cmpi eq, %arg0, %c0_i32 : i32
    %c0_i32_0 = arith.constant 0 : i32
    %1 = arith.select %0, %arg1, %c0_i32_0 : i32
    %c0_i32_1 = arith.constant 0 : i32
    %c0_i32_2 = arith.constant 0 : i32
    return %c0_i32_1, %1 : i32, i32
  }
  func.func @transform_3(%arg0: i32, %arg1: i32) -> (i32, i32) {
    %c0_i32 = arith.constant 0 : i32
    %0 = arith.cmpi eq, %arg0, %c0_i32 : i32
    %c0_i32_0 = arith.constant 0 : i32
    %1 = arith.select %0, %arg1, %c0_i32_0 : i32
    %c0_i32_1 = arith.constant 0 : i32
    %c0_i32_2 = arith.constant 0 : i32
    return %c0_i32_1, %1 : i32, i32
  }
  func.func @transform_4(%arg0: i32, %arg1: i32) -> (i32, i32) {
    %c0_i32 = arith.constant 0 : i32
    %c0_i32_0 = arith.constant 0 : i32
    %c0_i32_1 = arith.constant 0 : i32
    return %c0_i32, %c0_i32_0 : i32, i32
  }
  func.func @transform_5(%arg0: i32, %arg1: i32) -> (i32, i32) {
    %c0_i32 = arith.constant 0 : i32
    return %arg1, %arg0 : i32, i32
  }
  func.func @transform_6(%arg0: i32, %arg1: i32) -> (i32, i32) {
    %c0_i32 = arith.constant 0 : i32
    %c0_i32_0 = arith.constant 0 : i32
    return %c0_i32, %arg0 : i32, i32
  }
  func.func @transform_7(%arg0: i32, %arg1: i32) -> (i32, i32) {
    %c0_i32 = arith.constant 0 : i32
    %c0_i32_0 = arith.constant 0 : i32
    return %c0_i32, %arg0 : i32, i32
  }
}

</mosaic_0001>

<llo_original>
// kernel: tpu_custom_call.1
$region0: #{tpu_custom_call.1}
  #allocation0 [shape = 'u32[]', space=smem, size = 0x4, offset = 0x4, fixed_abs, tag = 'smem constant byte address 0x4 - core index']
  #allocation1 [shape = 'u32[144,128]{1,0:T(1,128)}', space=vmem, size = 0x12000, scoped, tag = 'internal scratch']
  #allocation2 [shape = 'f32[1,1]{1,0:T(1,128)S(6)}', space=smem, size = 0x200, scoped, tag = 'scoped memory for tpu_custom_call.1']
  %s0 = inlined_call_operand.hbm [shape: f32[8,128], index: 0, kind: input, shape index: {}]
  %s1 = inlined_call_operand.hbm [shape: f32[128,128], index: 1, kind: input, shape index: {}]
  %s2 = inlined_call_operand.vmem [shape: f32[1,128], index: 2, kind: input, shape index: {}]
  %s3 = inlined_call_operand.vmem [shape: f32[1,128], index: 3, kind: input, shape index: {}]
  %s4 = inlined_call_operand.<no memory space> [shape: f32[1,1], index: 4, kind: input, shape index: {}]
  %s5 = inlined_call_operand.hbm [shape: f32[128,128], index: 5, kind: input, shape index: {}]
  %s6 = inlined_call_operand.vmem [shape: f32[1,128], index: 6, kind: input, shape index: {}]
  %s7 = inlined_call_operand.hbm [shape: f32[8,128], index: 7, kind: output, shape index: {}]
  %s8 = sld [smem:[#allocation0]]
  $region54: #{tpu_custom_call.1} parent=0
    _
  %s10 = ssub.s32 1, %s8
  %s11 = scalar_select 0, %s10, %s8
  %12 = sst [smem:[#allocation2]] %s4
  $region1: #{tpu_custom_call.1} parent=0
    #allocation3 [shape = 'u8[4096]{0}', space=vmem, size = 0x1000, scoped, tag = 'input window, operand 0, single buffered']
    #allocation4 [shape = 's32[1]{0}', space=sflag, size = 0x4, scoped, tag = 'scoped memory for tpu_custom_call.1']
    #allocation5 [shape = 's32[1]{0}', space=sflag, size = 0x4, scoped, tag = 'scoped memory for tpu_custom_call.1']
    #allocation6 [shape = 'u8[65536]{0}', space=vmem, size = 0x10000, scoped, tag = 'input window, operand 1, single buffered']
    #allocation7 [shape = 's32[1]{0}', space=sflag, size = 0x4, scoped, tag = 'scoped memory for tpu_custom_call.1']
    #allocation8 [shape = 'u8[65536]{0}', space=vmem, size = 0x10000, scoped, tag = 'input window, operand 5, single buffered']
    #allocation9 [shape = 'u8[4096]{0}', space=vmem, size = 0x1000, scoped, tag = 'output window, operand 0, single buffered']
    %13 = vsyncpa [#allocation4], 0
    %14 = vsyncpa [#allocation7], 0
    %15 = vsyncpa [#allocation5], 0
    // Predicated region
    $region2: #{tpu_custom_call.1} parent=1 // pred_check
      _
    $region3: #{tpu_custom_call.1} parent=1 // pred_check_branch
      %17 = sbr.rel (0) target = $region5
    $region4: #{tpu_custom_call.1} parent=1 // pred_region
      %s19 = ssub.s32 128, 128
      %20 = vsyncadd [#allocation4], %s19
      %s22 = sshll.u32 [#allocation3], 4
      %s23 = int_to_ptr.vmem [resolvable:$true] %s22
      %25 = dma.hbm_to_vmem [thread:$0]  %s0, 128, %s23, [#allocation4]
    $region5: #{tpu_custom_call.1} parent=1 // pred_fallthru
      _
    // Predicated region
    $region6: #{tpu_custom_call.1} parent=1 // pred_check
      _
    $region7: #{tpu_custom_call.1} parent=1 // pred_check_branch
      %27 = sbr.rel (0) target = $region9
    $region8: #{tpu_custom_call.1} parent=1 // pred_region
      %p28 = scmp.eq.s32.totalorder 0, 0
      %s29 = scalar_select %p28, 0, 0
      %s31 = ssub.s32 2048, 2048
      %32 = vsyncadd [#allocation7], %s31
      %s33 = smul.addr %s29, 128
      %s34 = scalar_lea.hbm %s1, %s33
      %s35 = sshll.u32 [#allocation6], 4
      %s36 = int_to_ptr.vmem [resolvable:$true] %s35
      %41 = dma.hbm_to_vmem [thread:$0]  %s34, 2048, %s36, [#allocation7], 128, 128, 8
    $region9: #{tpu_custom_call.1} parent=1 // pred_fallthru
      _
    // Predicated region
    $region10: #{tpu_custom_call.1} parent=1 // pred_check
      _
    $region11: #{tpu_custom_call.1} parent=1 // pred_check_branch
      %43 = sbr.rel (0) target = $region13
    $region12: #{tpu_custom_call.1} parent=1 // pred_region
      %p44 = scmp.eq.s32.totalorder 0, 0
      %s45 = scalar_select %p44, 0, 0
      %p46 = scmp.lt.s32.totalorder %s45, 0
      %s47 = scalar_select %p46, %s45, 0
      %s48 = scalar_lea.vmem %s2, %s47
      %p49 = scmp.eq.s32.totalorder 0, 0
      %s50 = scalar_select %p49, 0, 0
    $region13: #{tpu_custom_call.1} parent=1 // pred_fallthru
      _
    // Predicated region
    $region14: #{tpu_custom_call.1} parent=1 // pred_check
      _
    $region15: #{tpu_custom_call.1} parent=1 // pred_check_branch
      %52 = sbr.rel (0) target = $region17
    $region16: #{tpu_custom_call.1} parent=1 // pred_region
      %p53 = scmp.eq.s32.totalorder 0, 0
      %s54 = scalar_select %p53, 0, 0
      %p55 = scmp.lt.s32.totalorder %s54, 0
      %s56 = scalar_select %p55, %s54, 0
      %s57 = scalar_lea.vmem %s3, %s56
      %p58 = scmp.eq.s32.totalorder 0, 0
      %s59 = scalar_select %p58, 0, 0
    $region17: #{tpu_custom_call.1} parent=1 // pred_fallthru
      _
    // Predicated region
    $region18: #{tpu_custom_call.1} parent=1 // pred_check
      _
    $region19: #{tpu_custom_call.1} parent=1 // pred_check_branch
      %61 = sbr.rel (0) target = $region21
    $region20: #{tpu_custom_call.1} parent=1 // pred_region
      _
    $region21: #{tpu_custom_call.1} parent=1 // pred_fallthru
      _
    // Predicated region
    $region22: #{tpu_custom_call.1} parent=1 // pred_check
      _
    $region23: #{tpu_custom_call.1} parent=1 // pred_check_branch
      %63 = sbr.rel (0) target = $region25
    $region24: #{tpu_custom_call.1} parent=1 // pred_region
      %s65 = ssub.s32 2048, 2048
      %66 = vsyncadd [#allocation7], %s65
      %s67 = sshll.u32 [#allocation8], 4
      %s68 = int_to_ptr.vmem [resolvable:$true] %s67
      %73 = dma.hbm_to_vmem [thread:$0]  %s5, 2048, %s68, [#allocation7], 128, 128, 8
    $region25: #{tpu_custom_call.1} parent=1 // pred_fallthru
      _
    // Predicated region
    $region26: #{tpu_custom_call.1} parent=1 // pred_check
      _
    $region27: #{tpu_custom_call.1} parent=1 // pred_check_branch
      %75 = sbr.rel (0) target = $region29
    $region28: #{tpu_custom_call.1} parent=1 // pred_region
      _
    $region29: #{tpu_custom_call.1} parent=1 // pred_fallthru
      _
    // Predicated region
    $region30: #{tpu_custom_call.1} parent=1 // pred_check
      _
    $region31: #{tpu_custom_call.1} parent=1 // pred_check_branch
      %77 = sbr.rel (0) target = $region33
    $region32: #{tpu_custom_call.1} parent=1 // pred_region
      %78 = dma.done [#allocation4], 128
    $region33: #{tpu_custom_call.1} parent=1 // pred_fallthru
      _
    // Predicated region
    $region34: #{tpu_custom_call.1} parent=1 // pred_check
      _
    $region35: #{tpu_custom_call.1} parent=1 // pred_check_branch
      %80 = sbr.rel (0) target = $region37
    $region36: #{tpu_custom_call.1} parent=1 // pred_region
      %81 = dma.done [#allocation7], 2048
    $region37: #{tpu_custom_call.1} parent=1 // pred_fallthru
      _
    // Predicated region
    $region38: #{tpu_custom_call.1} parent=1 // pred_check
      _
    $region39: #{tpu_custom_call.1} parent=1 // pred_check_branch
      %83 = sbr.rel (0) target = $region41
    $region40: #{tpu_custom_call.1} parent=1 // pred_region
      %84 = dma.done [#allocation7], 2048
    $region41: #{tpu_custom_call.1} parent=1 // pred_fallthru
      _
    %p85 = scmp.eq.s32.totalorder 0, 0
    %s86 = scalar_select %p85, 0, 0
    %p87 = scmp.lt.s32.totalorder %s86, 0
    %s88 = scalar_select %p87, %s86, 0
    %s89 = scalar_lea.vmem %s2, %s88
    %p90 = scmp.eq.s32.totalorder 0, 0
    %s91 = scalar_select %p90, 0, 0
    %p92 = scmp.lt.s32.totalorder %s91, 0
    %s93 = scalar_select %p92, %s91, 0
    %s94 = scalar_lea.vmem %s3, %s93
    %p95 = scmp.eq.s32.totalorder 0, 0
    %s96 = scalar_select %p95, 0, 0
    %p97 = scmp.eq.s32.totalorder 0, 0
    %s98 = scalar_select %p97, 0, 0
    %p99 = scmp.lt.s32.totalorder %s98, 0
    %s100 = scalar_select %p99, %s98, 0
    %s101 = scalar_lea.vmem %s2, %s100
    %p102 = scmp.eq.s32.totalorder 0, 0
    %s103 = scalar_select %p102, 0, 0
    %p104 = scmp.eq.s32.totalorder 0, 0
    %s105 = scalar_select %p104, 0, 0
    %p106 = scmp.lt.s32.totalorder %s105, 0
    %s107 = scalar_select %p106, %s105, 0
    %s108 = scalar_lea.vmem %s3, %s107
    %p109 = scmp.eq.s32.totalorder 0, 0
    %s110 = scalar_select %p109, 0, 0
    %p111 = scmp.eq.s32.totalorder 0, 0
    // Predicated region
    $region42: #{tpu_custom_call.1} parent=1 // pred_check
      %p112 = pneg %p111
    $region43: #{tpu_custom_call.1} parent=1 // pred_check_branch
      %114 = sbr.rel (%p112) target = $region45
    $region44: #{tpu_custom_call.1} parent=1 // pred_region
      %v115 = vld [vmem:[%s6] sm:$0x1]
      %v117 = vlaneseq
      %v118 = vshrl.u32 %v117, 7
      %v119 = vsub.s32 0, %v118
      %v120 = vrot.slane %v115, %v119
      %122 = vst [vmem:[#allocation9] sm:$0xff] %v120
    $region45: #{tpu_custom_call.1} parent=1 // pred_fallthru
      _
    %v123 = vld [vmem:[#allocation3] sm:$0xff]
    %v124 = vld [vmem:[#allocation6] sm:$0xff]
    %v125 = vld [vmem:[#allocation6 + $0x8] sm:$0xff]
    %v126 = vld [vmem:[#allocation6 + $0x10] sm:$0xff]
    %v127 = vld [vmem:[#allocation6 + $0x18] sm:$0xff]
    %v128 = vld [vmem:[#allocation6 + $0x20] sm:$0xff]
    %v129 = vld [vmem:[#allocation6 + $0x28] sm:$0xff]
    %v130 = vld [vmem:[#allocation6 + $0x30] sm:$0xff]
    %v131 = vld [vmem:[#allocation6 + $0x38] sm:$0xff]
    %v132 = vld [vmem:[#allocation6 + $0x40] sm:$0xff]
    %v133 = vld [vmem:[#allocation6 + $0x48] sm:$0xff]
    %v134 = vld [vmem:[#allocation6 + $0x50] sm:$0xff]
    %v135 = vld [vmem:[#allocation6 + $0x58] sm:$0xff]
    %v136 = vld [vmem:[#allocation6 + $0x60] sm:$0xff]
    %v137 = vld [vmem:[#allocation6 + $0x68] sm:$0xff]
    %v138 = vld [vmem:[#allocation6 + $0x70] sm:$0xff]
    %v139 = vld [vmem:[#allocation6 + $0x78] sm:$0xff]
    %140 = vmatprep.subr.mxu0 0.0
    %141 = vmatpush1.msra.mxu0 %v139
    %142 = vmatprep.subr.mxu0 0.0
    %143 = vmatpush1.msra.mxu0 %v138
    %144 = vmatprep.subr.mxu0 0.0
    %145 = vmatpush1.msra.mxu0 %v137
    %146 = vmatprep.subr.mxu0 0.0
    %147 = vmatpush1.msra.mxu0 %v136
    %148 = vmatprep.subr.mxu0 0.0
    %149 = vmatpush1.msra.mxu0 %v135
    %150 = vmatprep.subr.mxu0 0.0
    %151 = vmatpush1.msra.mxu0 %v134
    %152 = vmatprep.subr.mxu0 0.0
    %153 = vmatpush1.msra.mxu0 %v133
    %154 = vmatprep.subr.mxu0 0.0
    %155 = vmatpush1.msra.mxu0 %v132
    %156 = vmatprep.subr.mxu0 0.0
    %157 = vmatpush1.msra.mxu0 %v131
    %158 = vmatprep.subr.mxu0 0.0
    %159 = vmatpush1.msra.mxu0 %v130
    %160 = vmatprep.subr.mxu0 0.0
    %161 = vmatpush1.msra.mxu0 %v129
    %162 = vmatprep.subr.mxu0 0.0
    %163 = vmatpush1.msra.mxu0 %v128
    %164 = vmatprep.subr.mxu0 0.0
    %165 = vmatpush1.msra.mxu0 %v127
    %166 = vmatprep.subr.mxu0 0.0
    %167 = vmatpush1.msra.mxu0 %v126
    %168 = vmatprep.subr.mxu0 0.0
    %169 = vmatpush1.msra.mxu0 %v125
    %170 = vmatprep.subr.mxu0 0.0
    %171 = vmatpush1.msra.mxu0 %v124
    %172 = vmatprep.subr.mxu0 0.0
    %173 = vmatpush2.msra.mxu0 0.0
    %174 = vmatprep.subr.mxu0 0.0
    %175 = vmatpush2.msra.mxu0 0.0
    %176 = vmatprep.subr.mxu0 0.0
    %177 = vmatpush2.msra.mxu0 0.0
    %178 = vmatprep.subr.mxu0 0.0
    %179 = vmatpush2.msra.mxu0 0.0
    %180 = vmatprep.subr.mxu0 0.0
    %181 = vmatpush2.msra.mxu0 0.0
    %182 = vmatprep.subr.mxu0 0.0
    %183 = vmatpush2.msra.mxu0 0.0
    %184 = vmatprep.subr.mxu0 0.0
    %185 = vmatpush2.msra.mxu0 0.0
    %186 = vmatprep.subr.mxu0 0.0
    %187 = vmatpush2.msra.mxu0 0.0
    %188 = vmatprep.subr.mxu0 0.0
    %189 = vmatpush2.msra.mxu0 0.0
    %190 = vmatprep.subr.mxu0 0.0
    %191 = vmatpush2.msra.mxu0 0.0
    %192 = vmatprep.subr.mxu0 0.0
    %193 = vmatpush2.msra.mxu0 0.0
    %194 = vmatprep.subr.mxu0 0.0
    %195 = vmatpush2.msra.mxu0 0.0
    %196 = vmatprep.subr.mxu0 0.0
    %197 = vmatpush2.msra.mxu0 0.0
    %198 = vmatprep.subr.mxu0 0.0
    %199 = vmatpush2.msra.mxu0 0.0
    %200 = vmatprep.subr.mxu0 0.0
    %201 = vmatpush2.msra.mxu0 0.0
    %202 = vmatprep.subr.mxu0 0.0
    %203 = vmatpush2.msra.mxu0 0.0
    %204 = vmatprep.mubr.f32.mxu0 0.0
    %205 = vmatmul.mubr.f32.gmra.mxu0 %v123
    %v206 = vpop.f32.mrf.mxu0
    %v207 = vadd.f32 0.0, %v206
    %v208 = vpop.f32.mrf.mxu0
    %209 = vdwg.mxu0
    %v210 = vrot.slane %v207, 4
    %v211 = vadd.f32 %v207, %v210
    %v212 = vrot.slane %v211, 2
    %v213 = vadd.f32 %v211, %v212
    %v214 = vrot.slane %v213, 1
    %v215 = vadd.f32 %v213, %v214
    %v216 = vrcp.pop 8.0
    %v217 = vmul.f32 %v215, %v216
    %v218 = vsub.f32 %v207, %v217
    %v219 = vmul.f32 %v218, %v218
    %v220 = vrot.slane %v219, 4
    %v221 = vadd.f32 %v219, %v220
    %v222 = vrot.slane %v221, 2
    %v223 = vadd.f32 %v221, %v222
    %v224 = vrot.slane %v223, 1
    %v225 = vadd.f32 %v223, %v224
    %v226 = vmul.f32 %v225, %v216
    %v227 = vld [vmem:[%s101] sm:$0x1]
    %v228 = vadd.f32 %v226, 1e-05
    %v229 = vrsqrt.pop %v228
    %v230 = vmul.f32 %v227, %v229
    %v232 = vlaneseq
    %v233 = vshrl.u32 %v232, 7
    %v234 = vsub.s32 0, %v233
    %v235 = vrot.slane %v230, %v234
    %v237 = vmul.f32 %v218, %v235
    %v238 = vld [vmem:[%s108] sm:$0x1]
    %v240 = vlaneseq
    %v241 = vshrl.u32 %v240, 7
    %v242 = vsub.s32 0, %v241
    %v243 = vrot.slane %v238, %v242
    %v245 = vadd.f32 %v237, %v243
    %s246 = sld [smem:[#allocation2]]
    %vm247 = vcmp.ge.f32.partialorder %v245, 0.0
    %v248 = vstv %s246
    %v249 = vsel %vm247, 1.0, %v248
    %v250 = vmul.f32 %v245, %v249
    %v251 = vld [vmem:[#allocation9] sm:$0xff]
    %v252 = vld [vmem:[#allocation8] sm:$0xff]
    %v253 = vld [vmem:[#allocation8 + $0x8] sm:$0xff]
    %v254 = vld [vmem:[#allocation8 + $0x10] sm:$0xff]
    %v255 = vld [vmem:[#allocation8 + $0x18] sm:$0xff]
    %v256 = vld [vmem:[#allocation8 + $0x20] sm:$0xff]
    %v257 = vld [vmem:[#allocation8 + $0x28] sm:$0xff]
    %v258 = vld [vmem:[#allocation8 + $0x30] sm:$0xff]
    %v259 = vld [vmem:[#allocation8 + $0x38] sm:$0xff]
    %v260 = vld [vmem:[#allocation8 + $0x40] sm:$0xff]
    %v261 = vld [vmem:[#allocation8 + $0x48] sm:$0xff]
    %v262 = vld [vmem:[#allocation8 + $0x50] sm:$0xff]
    %v263 = vld [vmem:[#allocation8 + $0x58] sm:$0xff]
    %v264 = vld [vmem:[#allocation8 + $0x60] sm:$0xff]
    %v265 = vld [vmem:[#allocation8 + $0x68] sm:$0xff]
    %v266 = vld [vmem:[#allocation8 + $0x70] sm:$0xff]
    %v267 = vld [vmem:[#allocation8 + $0x78] sm:$0xff]
    %268 = vmatprep.subr.mxu0 0.0
    %269 = vmatpush1.msra.mxu0 %v267
    %270 = vmatprep.subr.mxu0 0.0
    %271 = vmatpush1.msra.mxu0 %v266
    %272 = vmatprep.subr.mxu0 0.0
    %273 = vmatpush1.msra.mxu0 %v265
    %274 = vmatprep.subr.mxu0 0.0
    %275 = vmatpush1.msra.mxu0 %v264
    %276 = vmatprep.subr.mxu0 0.0
    %277 = vmatpush1.msra.mxu0 %v263
    %278 = vmatprep.subr.mxu0 0.0
    %279 = vmatpush1.msra.mxu0 %v262
    %280 = vmatprep.subr.mxu0 0.0
    %281 = vmatpush1.msra.mxu0 %v261
    %282 = vmatprep.subr.mxu0 0.0
    %283 = vmatpush1.msra.mxu0 %v260
    %284 = vmatprep.subr.mxu0 0.0
    %285 = vmatpush1.msra.mxu0 %v259
    %286 = vmatprep.subr.mxu0 0.0
    %287 = vmatpush1.msra.mxu0 %v258
    %288 = vmatprep.subr.mxu0 0.0
    %289 = vmatpush1.msra.mxu0 %v257
    %290 = vmatprep.subr.mxu0 0.0
    %291 = vmatpush1.msra.mxu0 %v256
    %292 = vmatprep.subr.mxu0 0.0
    %293 = vmatpush1.msra.mxu0 %v255
    %294 = vmatprep.subr.mxu0 0.0
    %295 = vmatpush1.msra.mxu0 %v254
    %296 = vmatprep.subr.mxu0 0.0
    %297 = vmatpush1.msra.mxu0 %v253
    %298 = vmatprep.subr.mxu0 0.0
    %299 = vmatpush1.msra.mxu0 %v252
    %300 = vmatprep.subr.mxu0 0.0
    %301 = vmatpush2.msra.mxu0 0.0
    %302 = vmatprep.subr.mxu0 0.0
    %303 = vmatpush2.msra.mxu0 0.0
    %304 = vmatprep.subr.mxu0 0.0
    %305 = vmatpush2.msra.mxu0 0.0
    %306 = vmatprep.subr.mxu0 0.0
    %307 = vmatpush2.msra.mxu0 0.0
    %308 = vmatprep.subr.mxu0 0.0
    %309 = vmatpush2.msra.mxu0 0.0
    %310 = vmatprep.subr.mxu0 0.0
    %311 = vmatpush2.msra.mxu0 0.0
    %312 = vmatprep.subr.mxu0 0.0
    %313 = vmatpush2.msra.mxu0 0.0
    %314 = vmatprep.subr.mxu0 0.0
    %315 = vmatpush2.msra.mxu0 0.0
    %316 = vmatprep.subr.mxu0 0.0
    %317 = vmatpush2.msra.mxu0 0.0
    %318 = vmatprep.subr.mxu0 0.0
    %319 = vmatpush2.msra.mxu0 0.0
    %320 = vmatprep.subr.mxu0 0.0
    %321 = vmatpush2.msra.mxu0 0.0
    %322 = vmatprep.subr.mxu0 0.0
    %323 = vmatpush2.msra.mxu0 0.0
    %324 = vmatprep.subr.mxu0 0.0
    %325 = vmatpush2.msra.mxu0 0.0
    %326 = vmatprep.subr.mxu0 0.0
    %327 = vmatpush2.msra.mxu0 0.0
    %328 = vmatprep.subr.mxu0 0.0
    %329 = vmatpush2.msra.mxu0 0.0
    %330 = vmatprep.subr.mxu0 0.0
    %331 = vmatpush2.msra.mxu0 0.0
    %332 = vmatprep.mubr.f32.mxu0 0.0
    %333 = vmatmul.mubr.f32.gmra.mxu0 %v250
    %v334 = vpop.f32.mrf.mxu0
    %v335 = vadd.f32 0.0, %v334
    %v336 = vpop.f32.mrf.mxu0
    %337 = vdwg.mxu0
    %v338 = vadd.f32 %v251, %v335
    %339 = vst [vmem:[#allocation9] sm:$0xff] %v338
    // Predicated region
    $region46: #{tpu_custom_call.1} parent=1 // pred_check
      _
    $region47: #{tpu_custom_call.1} parent=1 // pred_check_branch
      %341 = sbr.rel (0) target = $region49
    $region48: #{tpu_custom_call.1} parent=1 // pred_region
      %s343 = ssub.s32 128, 128
      %344 = vsyncadd [#allocation5], %s343
      %s346 = sshll.u32 [#allocation9], 4
      %s347 = int_to_ptr.vmem [resolvable:$true] %s346
      %349 = dma.vmem_to_hbm [thread:$0]  %s347, 128, %s7, [#allocation5]
    $region49: #{tpu_custom_call.1} parent=1 // pred_fallthru
      _
    // Predicated region
    $region50: #{tpu_custom_call.1} parent=1 // pred_check
      _
    $region51: #{tpu_custom_call.1} parent=1 // pred_check_branch
      %351 = sbr.rel (0) target = $region53
    $region52: #{tpu_custom_call.1} parent=1 // pred_region
      %352 = dma.done [#allocation5], 128
    $region53: #{tpu_custom_call.1} parent=1 // pred_fallthru
      _
    %353 = vsyncpa [#allocation4], 1
    %354 = vsyncpa [#allocation7], 1
    %355 = vsyncpa [#allocation5], 1

</llo_original>
